<compile_context>
chip_gen: v5e
topology: v5e:2x2
jax: 0.10.0
libtpu: 0.0.40
codegen_flags: <defaults>
</compile_context>

<pallas_src>
import math
import jax
import jax.numpy as jnp
from jax.experimental import pallas as pl
from jax.experimental.pallas import tpu as pltpu

# ---------------- configuration (small synthetic BERT) ----------------
B = 2            # batch
S = 8            # sequence length
BS = B * S       # flattened tokens
H = 32           # hidden size (opt.pretrained_model_dim)
NH = 2           # attention heads
HD = H // NH     # head dim
FF = 64          # feed-forward intermediate size
P = 3            # opt.polarities_dim
LANE = 128       # lane-dense output width (logits padded to this)
VOCAB = 30
LN_EPS = 1e-12


def _gelu(x):
    # tanh-approximation GELU (EUP-friendly on TPU)
    return 0.5 * x * (1.0 + jnp.tanh(0.7978845608028654 * (x + 0.044715 * x * x * x)))


def _layernorm(h, g, b):
    mu = jnp.mean(h, axis=-1, keepdims=True)
    var = jnp.mean((h - mu) ** 2, axis=-1, keepdims=True)
    return (h - mu) * jax.lax.rsqrt(var + LN_EPS) * g + b


def bert_spc_kernel(x_ref, bias_ref,
                    wqkv_ref, bqkv_ref, wo_ref,
                    w1_ref, b1_ref, w2_ref,
                    vec_ref, wp_ref, wd_ref, bd_ref,
                    out_ref):
    f32 = jnp.float32
    bf16 = jnp.bfloat16

    x = x_ref[...]                       # (BS, H) f32, flattened batch*seq
    attn_bias = bias_ref[...]            # (BS, BS) additive mask (block-diag + key padding)

    vecs = vec_ref[...]                  # (8, H) packed vectors
    bo, ln1g, ln1b = vecs[0:1], vecs[1:2], vecs[2:3]
    b2, ln2g, ln2b, bp = vecs[3:4], vecs[4:5], vecs[5:6], vecs[6:7]

    # ---- fused QKV projection (single MXU push) --------------------------
    xb = x.astype(bf16)
    qkv = jnp.dot(xb, wqkv_ref[...], preferred_element_type=f32) + bqkv_ref[...]
    q = qkv[:, 0:H]
    k = qkv[:, H:2 * H].astype(bf16)
    v = qkv[:, 2 * H:3 * H]

    # ---- multi-head self-attention, heads via lane masks ------------------
    inv_sqrt_hd = 1.0 / math.sqrt(HD)
    lane = jax.lax.broadcasted_iota(jnp.int32, (1, H), 1)
    ctx = jnp.zeros((BS, H), f32)
    for h in range(NH):
        hm = ((lane >= h * HD) & (lane < (h + 1) * HD)).astype(f32)   # (1, H)
        qh = (q * hm * inv_sqrt_hd).astype(bf16)
        # contract last axis of both operands (no explicit transpose)
        s = jax.lax.dot_general(qh, k, (((1,), (1,)), ((), ())),
                                preferred_element_type=f32)           # (BS, BS)
        s = s + attn_bias
        s = s - jnp.max(s, axis=-1, keepdims=True)
        p = jnp.exp(s)
        denom = jnp.sum(p, axis=-1, keepdims=True)
        p = p * pl.reciprocal(denom, approx=True)
        vh = (v * hm).astype(bf16)
        ctx = ctx + jnp.dot(p.astype(bf16), vh, preferred_element_type=f32)

    attn_out = jnp.dot(ctx.astype(bf16), wo_ref[...], preferred_element_type=f32) + bo
    h1 = _layernorm(x + attn_out, ln1g, ln1b)

    # ---- feed-forward ------------------------------------------------------
    ff = jnp.dot(h1.astype(bf16), w1_ref[...], preferred_element_type=f32) + b1_ref[...]
    ff = _gelu(ff)
    ff = jnp.dot(ff.astype(bf16), w2_ref[...], preferred_element_type=f32) + b2
    h2 = _layernorm(h1 + ff, ln2g, ln2b)

    # ---- pooler: tanh(W_p @ h[CLS]) ----------------------------------------
    # CLS rows (0, S, 2S, ...) extracted with a 0/1 selection matmul (no reshape).
    rows = jax.lax.broadcasted_iota(jnp.int32, (B, BS), 0)
    cols = jax.lax.broadcasted_iota(jnp.int32, (B, BS), 1)
    sel = (cols == rows * S).astype(f32)                              # (B, BS)
    cls = jnp.dot(sel, h2, preferred_element_type=f32)                # (B, H)
    pooled = jnp.tanh(jnp.dot(cls.astype(bf16), wp_ref[...],
                              preferred_element_type=f32) + bp)

    # ---- dropout + dense classifier (lane-dense output) --------------------
    # TODO(synk): Dropout(0.5) treated as identity (inference mode); training-mode
    # stochastic masking via pltpu.prng_* not implemented.
    logits = jnp.dot(pooled.astype(bf16), wd_ref[...],
                     preferred_element_type=f32) + bd_ref[...]        # (B, 128)
    out_ref[...] = logits


def make_params(key):
    ks = jax.random.split(key, 10)
    scale = 0.02
    n = lambda k, s: jax.random.normal(k, s, jnp.float32) * scale
    return {
        "word_emb": n(ks[0], (VOCAB, H)),
        "pos_emb": n(ks[1], (S, H)),
        "wqkv": n(ks[2], (H, 3 * H)),
        "bqkv": jnp.zeros((1, 3 * H), jnp.float32),
        "wo": n(ks[3], (H, H)),
        "bo": jnp.zeros((1, H), jnp.float32),
        "ln1g": jnp.ones((1, H), jnp.float32),
        "ln1b": jnp.zeros((1, H), jnp.float32),
        "w1": n(ks[4], (H, FF)),
        "b1": jnp.zeros((1, FF), jnp.float32),
        "w2": n(ks[5], (FF, H)),
        "b2": jnp.zeros((1, H), jnp.float32),
        "ln2g": jnp.ones((1, H), jnp.float32),
        "ln2b": jnp.zeros((1, H), jnp.float32),
        "wp": n(ks[6], (H, H)),
        "bp": jnp.zeros((1, H), jnp.float32),
        "wd": n(ks[7], (H, P)),
        "bd": jnp.zeros((1, P), jnp.float32),
    }


def _zero_map(nd):
    return lambda i: (0,) * nd


def bert_spc_forward(token_ids, att_mask, params):
    """token_ids: (B, S) int32, att_mask: (B, S) {0,1}."""
    bf16 = jnp.bfloat16

    # --- glue: embedding lookup, flattening, mask/weight packing (plain JAX) ---
    x_emb = params["word_emb"][token_ids] + params["pos_emb"][None, :, :]   # (B, S, H)
    x_flat = x_emb.reshape(BS, H).astype(jnp.float32)

    # block-diagonal (same-sequence) + key-padding additive attention bias
    seg = jnp.repeat(jnp.arange(B, dtype=jnp.int32), S)                     # (BS,)
    same = seg[:, None] == seg[None, :]
    valid = att_mask.reshape(BS).astype(jnp.float32)[None, :] > 0.5
    attn_bias = jnp.where(same & valid, 0.0, -1e9).astype(jnp.float32)      # (BS, BS)

    # pack the (1, H) bias / LayerNorm vectors into one (8, H) tile
    vecs = jnp.concatenate(
        [params["bo"], params["ln1g"], params["ln1b"], params["b2"],
         params["ln2g"], params["ln2b"], params["bp"],
         jnp.zeros((1, H), jnp.float32)], axis=0)                           # (8, H)

    # lane-dense classifier: pad P=3 -> 128 lanes
    wd_pad = jnp.pad(params["wd"], ((0, 0), (0, LANE - P))).astype(bf16)    # (H, 128)
    bd_pad = jnp.pad(params["bd"], ((0, 0), (0, LANE - P))).astype(jnp.float32)

    args = [
        x_flat, attn_bias,
        params["wqkv"].astype(bf16), params["bqkv"],
        params["wo"].astype(bf16),
        params["w1"].astype(bf16), params["b1"],
        params["w2"].astype(bf16),
        vecs,
        params["wp"].astype(bf16),
        wd_pad, bd_pad,
    ]

    in_specs = [pl.BlockSpec(a.shape, _zero_map(a.ndim)) for a in args]
    out_specs = pl.BlockSpec((B, LANE), lambda i: (0, 0))

    out_pad = pl.pallas_call(
        bert_spc_kernel,
        out_shape=jax.ShapeDtypeStruct((B, LANE), jnp.float32),
        grid=(1,),
        in_specs=in_specs,
        out_specs=out_specs,
        compiler_params=pltpu.CompilerParams(
            dimension_semantics=("arbitrary",)),
    )(*args)

    return out_pad[:, :P]                                                   # (B, P)


if __name__ == "__main__":
    key = jax.random.PRNGKey(0)
    pkey, dkey = jax.random.split(key)
    params = make_params(pkey)

    # deterministic example inputs (inputs[2] = token ids, inputs[3] = att mask)
    token_ids = jax.random.randint(dkey, (B, S), 0, VOCAB, dtype=jnp.int32)
    att_mask = jnp.concatenate(
        [jnp.ones((B, S - 2), jnp.int32), jnp.zeros((B, 2), jnp.int32)], axis=1)

    logits = bert_spc_forward(token_ids, att_mask, params)
    logits = jax.block_until_ready(logits)

    assert logits.shape == (B, P)
    assert bool(jnp.all(jnp.isfinite(logits)))
    print("KERNEL_OK")
</pallas_src>

<mosaic_0001>
module attributes {stable_mosaic.version = 11 : i64} {
  func.func @bert_spc_kernel(%arg0: i32, %arg1: memref<16x32xf32, #tpu.memory_space<vmem>>, %arg2: memref<16x16xf32, #tpu.memory_space<vmem>>, %arg3: memref<32x96xbf16, #tpu.memory_space<vmem>>, %arg4: memref<1x96xf32, #tpu.memory_space<vmem>>, %arg5: memref<32x32xbf16, #tpu.memory_space<vmem>>, %arg6: memref<32x64xbf16, #tpu.memory_space<vmem>>, %arg7: memref<1x64xf32, #tpu.memory_space<vmem>>, %arg8: memref<64x32xbf16, #tpu.memory_space<vmem>>, %arg9: memref<8x32xf32, #tpu.memory_space<vmem>>, %arg10: memref<32x32xbf16, #tpu.memory_space<vmem>>, %arg11: memref<32x128xbf16, #tpu.memory_space<vmem>>, %arg12: memref<1x128xf32, #tpu.memory_space<vmem>>, %arg13: memref<2x128xf32, #tpu.memory_space<vmem>>) attributes {dimension_semantics = [#tpu.dimension_semantics<arbitrary>], iteration_bounds = array<i64: 1>, scalar_prefetch = 0 : i64, scratch_operands = 0 : i64, tpu.core_type = #tpu.core_type<tc>, window_params = [{pipeline_mode = #tpu.pipeline_mode<synchronous>, transform_indices = @transform_0, window_bounds = array<i64: 16, 32>}, {pipeline_mode = #tpu.pipeline_mode<synchronous>, transform_indices = @transform_1, window_bounds = array<i64: 16, 16>}, {pipeline_mode = #tpu.pipeline_mode<synchronous>, transform_indices = @transform_2, window_bounds = array<i64: 32, 96>}, {pipeline_mode = #tpu.pipeline_mode<synchronous>, transform_indices = @transform_3, window_bounds = array<i64: 1, 96>}, {pipeline_mode = #tpu.pipeline_mode<synchronous>, transform_indices = @transform_4, window_bounds = array<i64: 32, 32>}, {pipeline_mode = #tpu.pipeline_mode<synchronous>, transform_indices = @transform_5, window_bounds = array<i64: 32, 64>}, {pipeline_mode = #tpu.pipeline_mode<synchronous>, transform_indices = @transform_6, window_bounds = array<i64: 1, 64>}, {pipeline_mode = #tpu.pipeline_mode<synchronous>, transform_indices = @transform_7, window_bounds = array<i64: 64, 32>}, {pipeline_mode = #tpu.pipeline_mode<synchronous>, transform_indices = @transform_8, window_bounds = array<i64: 8, 32>}, {pipeline_mode = #tpu.pipeline_mode<synchronous>, transform_indices = @transform_9, window_bounds = array<i64: 32, 32>}, {pipeline_mode = #tpu.pipeline_mode<synchronous>, transform_indices = @transform_10, window_bounds = array<i64: 32, 128>}, {pipeline_mode = #tpu.pipeline_mode<synchronous>, transform_indices = @transform_11, window_bounds = array<i64: 1, 128>}, {pipeline_mode = #tpu.pipeline_mode<synchronous>, transform_indices = @transform_12, window_bounds = array<i64: 2, 128>}]} {
    %c0 = arith.constant 0 : index
    %c0_0 = arith.constant 0 : index
    %0 = vector.load %arg1[%c0, %c0_0] : memref<16x32xf32, #tpu.memory_space<vmem>>, vector<16x32xf32>
    %c0_1 = arith.constant 0 : index
    %c0_2 = arith.constant 0 : index
    %1 = vector.load %arg2[%c0_1, %c0_2] : memref<16x16xf32, #tpu.memory_space<vmem>>, vector<16x16xf32>
    %c0_3 = arith.constant 0 : index
    %c0_4 = arith.constant 0 : index
    %2 = vector.load %arg9[%c0_3, %c0_4] : memref<8x32xf32, #tpu.memory_space<vmem>>, vector<8x32xf32>
    %3 = vector.extract_strided_slice %2 {offsets = [0, 0], sizes = [1, 32], strides = [1, 1]} : vector<8x32xf32> to vector<1x32xf32>
    %4 = vector.extract_strided_slice %2 {offsets = [1, 0], sizes = [1, 32], strides = [1, 1]} : vector<8x32xf32> to vector<1x32xf32>
    %5 = vector.extract_strided_slice %2 {offsets = [2, 0], sizes = [1, 32], strides = [1, 1]} : vector<8x32xf32> to vector<1x32xf32>
    %6 = vector.extract_strided_slice %2 {offsets = [3, 0], sizes = [1, 32], strides = [1, 1]} : vector<8x32xf32> to vector<1x32xf32>
    %7 = vector.extract_strided_slice %2 {offsets = [4, 0], sizes = [1, 32], strides = [1, 1]} : vector<8x32xf32> to vector<1x32xf32>
    %8 = vector.extract_strided_slice %2 {offsets = [5, 0], sizes = [1, 32], strides = [1, 1]} : vector<8x32xf32> to vector<1x32xf32>
    %9 = vector.extract_strided_slice %2 {offsets = [6, 0], sizes = [1, 32], strides = [1, 1]} : vector<8x32xf32> to vector<1x32xf32>
    %10 = arith.truncf %0 : vector<16x32xf32> to vector<16x32xbf16>
    %c0_5 = arith.constant 0 : index
    %c0_6 = arith.constant 0 : index
    %11 = vector.load %arg3[%c0_5, %c0_6] : memref<32x96xbf16, #tpu.memory_space<vmem>>, vector<32x96xbf16>
    %cst = arith.constant dense<0.000000e+00> : vector<16x96xf32>
    %12 = tpu.matmul %10, %11, %cst {dimension_numbers = #tpu.dot_dimension_numbers<[1], [0], [0], [1], [0, 0, 1, 1], [], []>} : vector<16x32xbf16>, vector<32x96xbf16>, vector<16x96xf32> -> vector<16x96xf32>
    %c0_7 = arith.constant 0 : index
    %c0_8 = arith.constant 0 : index
    %13 = vector.load %arg4[%c0_7, %c0_8] : memref<1x96xf32, #tpu.memory_space<vmem>>, vector<1x96xf32>
    %14 = vector.broadcast %13 : vector<1x96xf32> to vector<16x96xf32>
    %15 = arith.addf %12, %14 : vector<16x96xf32>
    %16 = vector.extract_strided_slice %15 {offsets = [0, 0], sizes = [16, 32], strides = [1, 1]} : vector<16x96xf32> to vector<16x32xf32>
    %17 = vector.extract_strided_slice %15 {offsets = [0, 32], sizes = [16, 32], strides = [1, 1]} : vector<16x96xf32> to vector<16x32xf32>
    %18 = arith.truncf %17 : vector<16x32xf32> to vector<16x32xbf16>
    %19 = vector.extract_strided_slice %15 {offsets = [0, 64], sizes = [16, 32], strides = [1, 1]} : vector<16x96xf32> to vector<16x32xf32>
    %20 = tpu.iota {dimensions = array<i32: 1>} : vector<1x32xi32>
    %cst_9 = arith.constant 0.000000e+00 : f32
    %21 = vector.broadcast %cst_9 : f32 to vector<16x32xf32>
    %c0_i32 = arith.constant 0 : i32
    %22 = vector.broadcast %c0_i32 : i32 to vector<1x32xi32>
    %23 = arith.cmpi sge, %20, %22 : vector<1x32xi32>
    %c16_i32 = arith.constant 16 : i32
    %24 = vector.broadcast %c16_i32 : i32 to vector<1x32xi32>
    %25 = arith.cmpi slt, %20, %24 : vector<1x32xi32>
    %26 = arith.andi %23, %25 : vector<1x32xi1>
    %27 = arith.extui %26 : vector<1x32xi1> to vector<1x32xi32>
    %28 = arith.sitofp %27 : vector<1x32xi32> to vector<1x32xf32>
    %29 = vector.broadcast %28 : vector<1x32xf32> to vector<16x32xf32>
    %30 = arith.mulf %16, %29 : vector<16x32xf32>
    %cst_10 = arith.constant 2.500000e-01 : f32
    %31 = vector.broadcast %cst_10 : f32 to vector<16x32xf32>
    %32 = arith.mulf %30, %31 : vector<16x32xf32>
    %33 = arith.truncf %32 : vector<16x32xf32> to vector<16x32xbf16>
    %cst_11 = arith.constant dense<0.000000e+00> : vector<16x16xf32>
    %34 = tpu.matmul %33, %18, %cst_11 {dimension_numbers = #tpu.dot_dimension_numbers<[1], [1], [0], [0], [0, 0, 1, 0], [], []>} : vector<16x32xbf16>, vector<16x32xbf16>, vector<16x16xf32> -> vector<16x16xf32>
    %35 = arith.addf %34, %1 : vector<16x16xf32>
    %cst_12 = arith.constant dense<0xFF800000> : vector<16xf32>
    %36 = vector.multi_reduction <maximumf>, %35, %cst_12 [1] : vector<16x16xf32> to vector<16xf32>
    %37 = vector.shape_cast %36 : vector<16xf32> to vector<16x1xf32>
    %38 = vector.broadcast %37 : vector<16x1xf32> to vector<16x16xf32>
    %39 = arith.subf %35, %38 : vector<16x16xf32>
    %40 = math.exp %39 : vector<16x16xf32>
    %cst_13 = arith.constant dense<0.000000e+00> : vector<16xf32>
    %41 = vector.multi_reduction <add>, %40, %cst_13 [1] : vector<16x16xf32> to vector<16xf32>
    %42 = vector.shape_cast %41 : vector<16xf32> to vector<16x1xf32>
    %43 = tpu.reciprocal %42 {approx = true} : vector<16x1xf32> -> vector<16x1xf32>
    %44 = vector.broadcast %43 : vector<16x1xf32> to vector<16x16xf32>
    %45 = arith.mulf %40, %44 : vector<16x16xf32>
    %46 = vector.broadcast %28 : vector<1x32xf32> to vector<16x32xf32>
    %47 = arith.mulf %19, %46 : vector<16x32xf32>
    %48 = arith.truncf %47 : vector<16x32xf32> to vector<16x32xbf16>
    %49 = arith.truncf %45 : vector<16x16xf32> to vector<16x16xbf16>
    %cst_14 = arith.constant dense<0.000000e+00> : vector<16x32xf32>
    %50 = tpu.matmul %49, %48, %cst_14 {dimension_numbers = #tpu.dot_dimension_numbers<[1], [0], [0], [1], [0, 0, 1, 1], [], []>} : vector<16x16xbf16>, vector<16x32xbf16>, vector<16x32xf32> -> vector<16x32xf32>
    %51 = arith.addf %21, %50 : vector<16x32xf32>
    %c16_i32_15 = arith.constant 16 : i32
    %52 = vector.broadcast %c16_i32_15 : i32 to vector<1x32xi32>
    %53 = arith.cmpi sge, %20, %52 : vector<1x32xi32>
    %c32_i32 = arith.constant 32 : i32
    %54 = vector.broadcast %c32_i32 : i32 to vector<1x32xi32>
    %55 = arith.cmpi slt, %20, %54 : vector<1x32xi32>
    %56 = arith.andi %53, %55 : vector<1x32xi1>
    %57 = arith.extui %56 : vector<1x32xi1> to vector<1x32xi32>
    %58 = arith.sitofp %57 : vector<1x32xi32> to vector<1x32xf32>
    %59 = vector.broadcast %58 : vector<1x32xf32> to vector<16x32xf32>
    %60 = arith.mulf %16, %59 : vector<16x32xf32>
    %cst_16 = arith.constant 2.500000e-01 : f32
    %61 = vector.broadcast %cst_16 : f32 to vector<16x32xf32>
    %62 = arith.mulf %60, %61 : vector<16x32xf32>
    %63 = arith.truncf %62 : vector<16x32xf32> to vector<16x32xbf16>
    %cst_17 = arith.constant dense<0.000000e+00> : vector<16x16xf32>
    %64 = tpu.matmul %63, %18, %cst_17 {dimension_numbers = #tpu.dot_dimension_numbers<[1], [1], [0], [0], [0, 0, 1, 0], [], []>} : vector<16x32xbf16>, vector<16x32xbf16>, vector<16x16xf32> -> vector<16x16xf32>
    %65 = arith.addf %64, %1 : vector<16x16xf32>
    %cst_18 = arith.constant dense<0xFF800000> : vector<16xf32>
    %66 = vector.multi_reduction <maximumf>, %65, %cst_18 [1] : vector<16x16xf32> to vector<16xf32>
    %67 = vector.shape_cast %66 : vector<16xf32> to vector<16x1xf32>
    %68 = vector.broadcast %67 : vector<16x1xf32> to vector<16x16xf32>
    %69 = arith.subf %65, %68 : vector<16x16xf32>
    %70 = math.exp %69 : vector<16x16xf32>
    %cst_19 = arith.constant dense<0.000000e+00> : vector<16xf32>
    %71 = vector.multi_reduction <add>, %70, %cst_19 [1] : vector<16x16xf32> to vector<16xf32>
    %72 = vector.shape_cast %71 : vector<16xf32> to vector<16x1xf32>
    %73 = tpu.reciprocal %72 {approx = true} : vector<16x1xf32> -> vector<16x1xf32>
    %74 = vector.broadcast %73 : vector<16x1xf32> to vector<16x16xf32>
    %75 = arith.mulf %70, %74 : vector<16x16xf32>
    %76 = vector.broadcast %58 : vector<1x32xf32> to vector<16x32xf32>
    %77 = arith.mulf %19, %76 : vector<16x32xf32>
    %78 = arith.truncf %77 : vector<16x32xf32> to vector<16x32xbf16>
    %79 = arith.truncf %75 : vector<16x16xf32> to vector<16x16xbf16>
    %cst_20 = arith.constant dense<0.000000e+00> : vector<16x32xf32>
    %80 = tpu.matmul %79, %78, %cst_20 {dimension_numbers = #tpu.dot_dimension_numbers<[1], [0], [0], [1], [0, 0, 1, 1], [], []>} : vector<16x16xbf16>, vector<16x32xbf16>, vector<16x32xf32> -> vector<16x32xf32>
    %81 = arith.addf %51, %80 : vector<16x32xf32>
    %82 = arith.truncf %81 : vector<16x32xf32> to vector<16x32xbf16>
    %c0_21 = arith.constant 0 : index
    %c0_22 = arith.constant 0 : index
    %83 = vector.load %arg5[%c0_21, %c0_22] : memref<32x32xbf16, #tpu.memory_space<vmem>>, vector<32x32xbf16>
    %cst_23 = arith.constant dense<0.000000e+00> : vector<16x32xf32>
    %84 = tpu.matmul %82, %83, %cst_23 {dimension_numbers = #tpu.dot_dimension_numbers<[1], [0], [0], [1], [0, 0, 1, 1], [], []>} : vector<16x32xbf16>, vector<32x32xbf16>, vector<16x32xf32> -> vector<16x32xf32>
    %85 = vector.broadcast %3 : vector<1x32xf32> to vector<16x32xf32>
    %86 = arith.addf %84, %85 : vector<16x32xf32>
    %87 = arith.addf %0, %86 : vector<16x32xf32>
    %cst_24 = arith.constant dense<0.000000e+00> : vector<16xf32>
    %88 = vector.multi_reduction <add>, %87, %cst_24 [1] : vector<16x32xf32> to vector<16xf32>
    %89 = vector.shape_cast %88 : vector<16xf32> to vector<16x1xf32>
    %cst_25 = arith.constant 3.200000e+01 : f32
    %90 = vector.broadcast %cst_25 : f32 to vector<16x1xf32>
    %91 = arith.divf %89, %90 : vector<16x1xf32>
    %92 = vector.broadcast %91 : vector<16x1xf32> to vector<16x32xf32>
    %93 = arith.subf %87, %92 : vector<16x32xf32>
    %94 = arith.mulf %93, %93 : vector<16x32xf32>
    %cst_26 = arith.constant dense<0.000000e+00> : vector<16xf32>
    %95 = vector.multi_reduction <add>, %94, %cst_26 [1] : vector<16x32xf32> to vector<16xf32>
    %96 = vector.shape_cast %95 : vector<16xf32> to vector<16x1xf32>
    %cst_27 = arith.constant 3.200000e+01 : f32
    %97 = vector.broadcast %cst_27 : f32 to vector<16x1xf32>
    %98 = arith.divf %96, %97 : vector<16x1xf32>
    %99 = vector.broadcast %91 : vector<16x1xf32> to vector<16x32xf32>
    %100 = arith.subf %87, %99 : vector<16x32xf32>
    %cst_28 = arith.constant 9.99999996E-13 : f32
    %101 = vector.broadcast %cst_28 : f32 to vector<16x1xf32>
    %102 = arith.addf %98, %101 : vector<16x1xf32>
    %103 = math.rsqrt %102 : vector<16x1xf32>
    %104 = vector.broadcast %103 : vector<16x1xf32> to vector<16x32xf32>
    %105 = arith.mulf %100, %104 : vector<16x32xf32>
    %106 = vector.broadcast %4 : vector<1x32xf32> to vector<16x32xf32>
    %107 = arith.mulf %105, %106 : vector<16x32xf32>
    %108 = vector.broadcast %5 : vector<1x32xf32> to vector<16x32xf32>
    %109 = arith.addf %107, %108 : vector<16x32xf32>
    %110 = arith.truncf %109 : vector<16x32xf32> to vector<16x32xbf16>
    %c0_29 = arith.constant 0 : index
    %c0_30 = arith.constant 0 : index
    %111 = vector.load %arg6[%c0_29, %c0_30] : memref<32x64xbf16, #tpu.memory_space<vmem>>, vector<32x64xbf16>
    %cst_31 = arith.constant dense<0.000000e+00> : vector<16x64xf32>
    %112 = tpu.matmul %110, %111, %cst_31 {dimension_numbers = #tpu.dot_dimension_numbers<[1], [0], [0], [1], [0, 0, 1, 1], [], []>} : vector<16x32xbf16>, vector<32x64xbf16>, vector<16x64xf32> -> vector<16x64xf32>
    %c0_32 = arith.constant 0 : index
    %c0_33 = arith.constant 0 : index
    %113 = vector.load %arg7[%c0_32, %c0_33] : memref<1x64xf32, #tpu.memory_space<vmem>>, vector<1x64xf32>
    %114 = vector.broadcast %113 : vector<1x64xf32> to vector<16x64xf32>
    %115 = arith.addf %112, %114 : vector<16x64xf32>
    %cst_34 = arith.constant 5.000000e-01 : f32
    %116 = vector.broadcast %cst_34 : f32 to vector<16x64xf32>
    %117 = arith.mulf %116, %115 : vector<16x64xf32>
    %cst_35 = arith.constant 4.471500e-02 : f32
    %118 = vector.broadcast %cst_35 : f32 to vector<16x64xf32>
    %119 = arith.mulf %118, %115 : vector<16x64xf32>
    %120 = arith.mulf %119, %115 : vector<16x64xf32>
    %121 = arith.mulf %120, %115 : vector<16x64xf32>
    %122 = arith.addf %115, %121 : vector<16x64xf32>
    %cst_36 = arith.constant 0.797884583 : f32
    %123 = vector.broadcast %cst_36 : f32 to vector<16x64xf32>
    %124 = arith.mulf %123, %122 : vector<16x64xf32>
    %125 = math.tanh %124 : vector<16x64xf32>
    %cst_37 = arith.constant 1.000000e+00 : f32
    %126 = vector.broadcast %cst_37 : f32 to vector<16x64xf32>
    %127 = arith.addf %126, %125 : vector<16x64xf32>
    %128 = arith.mulf %117, %127 : vector<16x64xf32>
    %129 = arith.truncf %128 : vector<16x64xf32> to vector<16x64xbf16>
    %c0_38 = arith.constant 0 : index
    %c0_39 = arith.constant 0 : index
    %130 = vector.load %arg8[%c0_38, %c0_39] : memref<64x32xbf16, #tpu.memory_space<vmem>>, vector<64x32xbf16>
    %cst_40 = arith.constant dense<0.000000e+00> : vector<16x32xf32>
    %131 = tpu.matmul %129, %130, %cst_40 {dimension_numbers = #tpu.dot_dimension_numbers<[1], [0], [0], [1], [0, 0, 1, 1], [], []>} : vector<16x64xbf16>, vector<64x32xbf16>, vector<16x32xf32> -> vector<16x32xf32>
    %132 = vector.broadcast %6 : vector<1x32xf32> to vector<16x32xf32>
    %133 = arith.addf %131, %132 : vector<16x32xf32>
    %134 = arith.addf %109, %133 : vector<16x32xf32>
    %cst_41 = arith.constant dense<0.000000e+00> : vector<16xf32>
    %135 = vector.multi_reduction <add>, %134, %cst_41 [1] : vector<16x32xf32> to vector<16xf32>
    %136 = vector.shape_cast %135 : vector<16xf32> to vector<16x1xf32>
    %cst_42 = arith.constant 3.200000e+01 : f32
    %137 = vector.broadcast %cst_42 : f32 to vector<16x1xf32>
    %138 = arith.divf %136, %137 : vector<16x1xf32>
    %139 = vector.broadcast %138 : vector<16x1xf32> to vector<16x32xf32>
    %140 = arith.subf %134, %139 : vector<16x32xf32>
    %141 = arith.mulf %140, %140 : vector<16x32xf32>
    %cst_43 = arith.constant dense<0.000000e+00> : vector<16xf32>
    %142 = vector.multi_reduction <add>, %141, %cst_43 [1] : vector<16x32xf32> to vector<16xf32>
    %143 = vector.shape_cast %142 : vector<16xf32> to vector<16x1xf32>
    %cst_44 = arith.constant 3.200000e+01 : f32
    %144 = vector.broadcast %cst_44 : f32 to vector<16x1xf32>
    %145 = arith.divf %143, %144 : vector<16x1xf32>
    %146 = vector.broadcast %138 : vector<16x1xf32> to vector<16x32xf32>
    %147 = arith.subf %134, %146 : vector<16x32xf32>
    %cst_45 = arith.constant 9.99999996E-13 : f32
    %148 = vector.broadcast %cst_45 : f32 to vector<16x1xf32>
    %149 = arith.addf %145, %148 : vector<16x1xf32>
    %150 = math.rsqrt %149 : vector<16x1xf32>
    %151 = vector.broadcast %150 : vector<16x1xf32> to vector<16x32xf32>
    %152 = arith.mulf %147, %151 : vector<16x32xf32>
    %153 = vector.broadcast %7 : vector<1x32xf32> to vector<16x32xf32>
    %154 = arith.mulf %152, %153 : vector<16x32xf32>
    %155 = vector.broadcast %8 : vector<1x32xf32> to vector<16x32xf32>
    %156 = arith.addf %154, %155 : vector<16x32xf32>
    %157 = tpu.iota {dimensions = array<i32: 0>} : vector<2x16xi32>
    %158 = tpu.iota {dimensions = array<i32: 1>} : vector<2x16xi32>
    %c8_i32 = arith.constant 8 : i32
    %159 = vector.broadcast %c8_i32 : i32 to vector<2x16xi32>
    %160 = arith.muli %157, %159 : vector<2x16xi32>
    %161 = arith.cmpi eq, %158, %160 : vector<2x16xi32>
    %162 = arith.extui %161 : vector<2x16xi1> to vector<2x16xi32>
    %163 = arith.sitofp %162 : vector<2x16xi32> to vector<2x16xf32>
    %cst_46 = arith.constant dense<0.000000e+00> : vector<2x32xf32>
    %164 = tpu.matmul %163, %156, %cst_46 {dimension_numbers = #tpu.dot_dimension_numbers<[1], [0], [0], [1], [0, 0, 1, 1], [], []>} : vector<2x16xf32>, vector<16x32xf32>, vector<2x32xf32> -> vector<2x32xf32>
    %165 = arith.truncf %164 : vector<2x32xf32> to vector<2x32xbf16>
    %c0_47 = arith.constant 0 : index
    %c0_48 = arith.constant 0 : index
    %166 = vector.load %arg10[%c0_47, %c0_48] : memref<32x32xbf16, #tpu.memory_space<vmem>>, vector<32x32xbf16>
    %cst_49 = arith.constant dense<0.000000e+00> : vector<2x32xf32>
    %167 = tpu.matmul %165, %166, %cst_49 {dimension_numbers = #tpu.dot_dimension_numbers<[1], [0], [0], [1], [0, 0, 1, 1], [], []>} : vector<2x32xbf16>, vector<32x32xbf16>, vector<2x32xf32> -> vector<2x32xf32>
    %168 = vector.broadcast %9 : vector<1x32xf32> to vector<2x32xf32>
    %169 = arith.addf %167, %168 : vector<2x32xf32>
    %170 = math.tanh %169 : vector<2x32xf32>
    %171 = arith.truncf %170 : vector<2x32xf32> to vector<2x32xbf16>
    %c0_50 = arith.constant 0 : index
    %c0_51 = arith.constant 0 : index
    %172 = vector.load %arg11[%c0_50, %c0_51] : memref<32x128xbf16, #tpu.memory_space<vmem>>, vector<32x128xbf16>
    %cst_52 = arith.constant dense<0.000000e+00> : vector<2x128xf32>
    %173 = tpu.matmul %171, %172, %cst_52 {dimension_numbers = #tpu.dot_dimension_numbers<[1], [0], [0], [1], [0, 0, 1, 1], [], []>} : vector<2x32xbf16>, vector<32x128xbf16>, vector<2x128xf32> -> vector<2x128xf32>
    %c0_53 = arith.constant 0 : index
    %c0_54 = arith.constant 0 : index
    %174 = vector.load %arg12[%c0_53, %c0_54] : memref<1x128xf32, #tpu.memory_space<vmem>>, vector<1x128xf32>
    %175 = vector.broadcast %174 : vector<1x128xf32> to vector<2x128xf32>
    %176 = arith.addf %173, %175 : vector<2x128xf32>
    %c0_55 = arith.constant 0 : index
    %c0_56 = arith.constant 0 : index
    %177 = vector.load %arg13[%c0_55, %c0_56] : memref<2x128xf32, #tpu.memory_space<vmem>>, vector<2x128xf32>
    tpu.vector_store %arg13[%c0_55, %c0_56], %176 {strides = array<i32>} : memref<2x128xf32, #tpu.memory_space<vmem>>, vector<2x128xf32>,
    return
  }
  func.func @transform_0(%arg0: i32) -> (i32, i32) {
    %c0_i32 = arith.constant 0 : i32
    %c0_i32_0 = arith.constant 0 : i32
    %c0_i32_1 = arith.constant 0 : i32
    return %c0_i32, %c0_i32_0 : i32, i32
  }
  func.func @transform_1(%arg0: i32) -> (i32, i32) {
    %c0_i32 = arith.constant 0 : i32
    %c0_i32_0 = arith.constant 0 : i32
    %c0_i32_1 = arith.constant 0 : i32
    return %c0_i32, %c0_i32_0 : i32, i32
  }
  func.func @transform_2(%arg0: i32) -> (i32, i32) {
    %c0_i32 = arith.constant 0 : i32
    %c0_i32_0 = arith.constant 0 : i32
    %c0_i32_1 = arith.constant 0 : i32
    return %c0_i32, %c0_i32_0 : i32, i32
  }
  func.func @transform_3(%arg0: i32) -> (i32, i32) {
    %c0_i32 = arith.constant 0 : i32
    %c0_i32_0 = arith.constant 0 : i32
    %c0_i32_1 = arith.constant 0 : i32
    return %c0_i32, %c0_i32_0 : i32, i32
  }
  func.func @transform_4(%arg0: i32) -> (i32, i32) {
    %c0_i32 = arith.constant 0 : i32
    %c0_i32_0 = arith.constant 0 : i32
    %c0_i32_1 = arith.constant 0 : i32
    return %c0_i32, %c0_i32_0 : i32, i32
  }
  func.func @transform_5(%arg0: i32) -> (i32, i32) {
    %c0_i32 = arith.constant 0 : i32
    %c0_i32_0 = arith.constant 0 : i32
    %c0_i32_1 = arith.constant 0 : i32
    return %c0_i32, %c0_i32_0 : i32, i32
  }
  func.func @transform_6(%arg0: i32) -> (i32, i32) {
    %c0_i32 = arith.constant 0 : i32
    %c0_i32_0 = arith.constant 0 : i32
    %c0_i32_1 = arith.constant 0 : i32
    return %c0_i32, %c0_i32_0 : i32, i32
  }
  func.func @transform_7(%arg0: i32) -> (i32, i32) {
    %c0_i32 = arith.constant 0 : i32
    %c0_i32_0 = arith.constant 0 : i32
    %c0_i32_1 = arith.constant 0 : i32
    return %c0_i32, %c0_i32_0 : i32, i32
  }
  func.func @transform_8(%arg0: i32) -> (i32, i32) {
    %c0_i32 = arith.constant 0 : i32
    %c0_i32_0 = arith.constant 0 : i32
    %c0_i32_1 = arith.constant 0 : i32
    return %c0_i32, %c0_i32_0 : i32, i32
  }
  func.func @transform_9(%arg0: i32) -> (i32, i32) {
    %c0_i32 = arith.constant 0 : i32
    %c0_i32_0 = arith.constant 0 : i32
    %c0_i32_1 = arith.constant 0 : i32
    return %c0_i32, %c0_i32_0 : i32, i32
  }
  func.func @transform_10(%arg0: i32) -> (i32, i32) {
    %c0_i32 = arith.constant 0 : i32
    %c0_i32_0 = arith.constant 0 : i32
    %c0_i32_1 = arith.constant 0 : i32
    return %c0_i32, %c0_i32_0 : i32, i32
  }
  func.func @transform_11(%arg0: i32) -> (i32, i32) {
    %c0_i32 = arith.constant 0 : i32
    %c0_i32_0 = arith.constant 0 : i32
    %c0_i32_1 = arith.constant 0 : i32
    return %c0_i32, %c0_i32_0 : i32, i32
  }
  func.func @transform_12(%arg0: i32) -> (i32, i32) {
    %c0_i32 = arith.constant 0 : i32
    %c0_i32_0 = arith.constant 0 : i32
    %c0_i32_1 = arith.constant 0 : i32
    return %c0_i32, %c0_i32_0 : i32, i32
  }
}

</mosaic_0001>

<llo_original>
// kernel: tpu_custom_call.1
$region0: #{tpu_custom_call.1}
  #allocation0 [shape = 'u32[]', space=smem, size = 0x4, offset = 0x4, fixed_abs, tag = 'smem constant byte address 0x4 - core index']
  #allocation1 [shape = 'u32[72,128]{1,0:T(1,128)}', space=vmem, size = 0x9000, scoped, tag = 'internal scratch']
  %s0 = inlined_call_operand.vmem [shape: f32[16,32], index: 0, kind: input, shape index: {}]
  %s1 = inlined_call_operand.vmem [shape: f32[16,16], index: 1, kind: input, shape index: {}]
  %s2 = inlined_call_operand.vmem [shape: bf16[32,96], index: 2, kind: input, shape index: {}]
  %s3 = inlined_call_operand.vmem [shape: f32[1,96], index: 3, kind: input, shape index: {}]
  %s4 = inlined_call_operand.hbm [shape: bf16[32,32], index: 4, kind: input, shape index: {}]
  %s5 = inlined_call_operand.hbm [shape: bf16[32,64], index: 5, kind: input, shape index: {}]
  %s6 = inlined_call_operand.vmem [shape: f32[1,64], index: 6, kind: input, shape index: {}]
  %s7 = inlined_call_operand.vmem [shape: bf16[64,32], index: 7, kind: input, shape index: {}]
  %s8 = inlined_call_operand.hbm [shape: f32[8,32], index: 8, kind: input, shape index: {}]
  %s9 = inlined_call_operand.hbm [shape: bf16[32,32], index: 9, kind: input, shape index: {}]
  %s10 = inlined_call_operand.hbm [shape: bf16[32,128], index: 10, kind: input, shape index: {}]
  %s11 = inlined_call_operand.vmem [shape: f32[1,128], index: 11, kind: input, shape index: {}]
  %s12 = inlined_call_operand.hbm [shape: f32[2,128], index: 12, kind: output, shape index: {}]
  %s13 = sld [smem:[#allocation0]]
  $region78: #{tpu_custom_call.1} parent=0
    _
  %s15 = ssub.s32 1, %s13
  %s16 = scalar_select 0, %s15, %s13
  $region1: #{tpu_custom_call.1} parent=0
    #allocation2 [shape = 'u8[8192]{0}', space=vmem, size = 0x2000, scoped, tag = 'input window, operand 4, single buffered']
    #allocation3 [shape = 's32[1]{0}', space=sflag, size = 0x4, scoped, tag = 'scoped memory for tpu_custom_call.1']
    #allocation4 [shape = 's32[1]{0}', space=sflag, size = 0x4, scoped, tag = 'scoped memory for tpu_custom_call.1']
    #allocation5 [shape = 'u8[8192]{0}', space=vmem, size = 0x2000, scoped, tag = 'input window, operand 5, single buffered']
    #allocation6 [shape = 's32[1]{0}', space=sflag, size = 0x4, scoped, tag = 'scoped memory for tpu_custom_call.1']
    #allocation7 [shape = 'u8[4096]{0}', space=vmem, size = 0x1000, scoped, tag = 'input window, operand 8, single buffered']
    #allocation8 [shape = 'u8[8192]{0}', space=vmem, size = 0x2000, scoped, tag = 'input window, operand 9, single buffered']
    #allocation9 [shape = 's32[1]{0}', space=sflag, size = 0x4, scoped, tag = 'scoped memory for tpu_custom_call.1']
    #allocation10 [shape = 'u8[8192]{0}', space=vmem, size = 0x2000, scoped, tag = 'input window, operand 10, single buffered']
    #allocation11 [shape = 'u8[1024]{0}', space=vmem, size = 0x400, scoped, tag = 'output window, operand 0, single buffered']
    %17 = vsyncpa [#allocation3], 0
    %18 = vsyncpa [#allocation6], 0
    %19 = vsyncpa [#allocation9], 0
    %20 = vsyncpa [#allocation4], 0
    // Predicated region
    $region2: #{tpu_custom_call.1} parent=1 // pred_check
      _
    $region3: #{tpu_custom_call.1} parent=1 // pred_check_branch
      %22 = sbr.rel (0) target = $region5
    $region4: #{tpu_custom_call.1} parent=1 // pred_region
      _
    $region5: #{tpu_custom_call.1} parent=1 // pred_fallthru
      _
    // Predicated region
    $region6: #{tpu_custom_call.1} parent=1 // pred_check
      _
    $region7: #{tpu_custom_call.1} parent=1 // pred_check_branch
      %24 = sbr.rel (0) target = $region9
    $region8: #{tpu_custom_call.1} parent=1 // pred_region
      _
    $region9: #{tpu_custom_call.1} parent=1 // pred_fallthru
      _
    // Predicated region
    $region10: #{tpu_custom_call.1} parent=1 // pred_check
      _
    $region11: #{tpu_custom_call.1} parent=1 // pred_check_branch
      %26 = sbr.rel (0) target = $region13
    $region12: #{tpu_custom_call.1} parent=1 // pred_region
      _
    $region13: #{tpu_custom_call.1} parent=1 // pred_fallthru
      _
    // Predicated region
    $region14: #{tpu_custom_call.1} parent=1 // pred_check
      _
    $region15: #{tpu_custom_call.1} parent=1 // pred_check_branch
      %28 = sbr.rel (0) target = $region17
    $region16: #{tpu_custom_call.1} parent=1 // pred_region
      _
    $region17: #{tpu_custom_call.1} parent=1 // pred_fallthru
      _
    // Predicated region
    $region18: #{tpu_custom_call.1} parent=1 // pred_check
      _
    $region19: #{tpu_custom_call.1} parent=1 // pred_check_branch
      %30 = sbr.rel (0) target = $region21
    $region20: #{tpu_custom_call.1} parent=1 // pred_region
      %32 = vsyncadd [#allocation3], 0
      %s33 = sshll.u32 %s4, 4
      %s34 = int_to_ptr.hbm [resolvable:$true] %s33
      %s35 = sshll.u32 [#allocation2], 4
      %s36 = int_to_ptr.vmem [resolvable:$true] %s35
      %41 = dma.hbm_to_vmem [thread:$0]  %s34, 256, %s36, [#allocation3], 64, 64, 4
    $region21: #{tpu_custom_call.1} parent=1 // pred_fallthru
      _
    // Predicated region
    $region22: #{tpu_custom_call.1} parent=1 // pred_check
      _
    $region23: #{tpu_custom_call.1} parent=1 // pred_check_branch
      %43 = sbr.rel (0) target = $region25
    $region24: #{tpu_custom_call.1} parent=1 // pred_region
      %45 = vsyncadd [#allocation6], 0
      %s46 = sshll.u32 %s5, 4
      %s47 = int_to_ptr.hbm [resolvable:$true] %s46
      %s48 = sshll.u32 [#allocation5], 4
      %s49 = int_to_ptr.vmem [resolvable:$true] %s48
      %54 = dma.hbm_to_vmem [thread:$0]  %s47, 256, %s49, [#allocation6], 64, 64, 4
    $region25: #{tpu_custom_call.1} parent=1 // pred_fallthru
      _
    // Predicated region
    $region26: #{tpu_custom_call.1} parent=1 // pred_check
      _
    $region27: #{tpu_custom_call.1} parent=1 // pred_check_branch
      %56 = sbr.rel (0) target = $region29
    $region28: #{tpu_custom_call.1} parent=1 // pred_region
      _
    $region29: #{tpu_custom_call.1} parent=1 // pred_fallthru
      _
    // Predicated region
    $region30: #{tpu_custom_call.1} parent=1 // pred_check
      _
    $region31: #{tpu_custom_call.1} parent=1 // pred_check_branch
      %58 = sbr.rel (0) target = $region33
    $region32: #{tpu_custom_call.1} parent=1 // pred_region
      _
    $region33: #{tpu_custom_call.1} parent=1 // pred_fallthru
      _
    // Predicated region
    $region34: #{tpu_custom_call.1} parent=1 // pred_check
      _
    $region35: #{tpu_custom_call.1} parent=1 // pred_check_branch
      %60 = sbr.rel (0) target = $region37
    $region36: #{tpu_custom_call.1} parent=1 // pred_region
      %62 = vsyncadd [#allocation6], 0
      %s64 = sshll.u32 %s8, 4
      %s65 = int_to_ptr.hbm [resolvable:$true] %s64
      %s66 = sshll.u32 [#allocation7], 4
      %s67 = int_to_ptr.vmem [resolvable:$true] %s66
      %69 = dma.hbm_to_vmem [thread:$0]  %s65, 128, %s67, [#allocation6]
    $region37: #{tpu_custom_call.1} parent=1 // pred_fallthru
      _
    // Predicated region
    $region38: #{tpu_custom_call.1} parent=1 // pred_check
      _
    $region39: #{tpu_custom_call.1} parent=1 // pred_check_branch
      %71 = sbr.rel (0) target = $region41
    $region40: #{tpu_custom_call.1} parent=1 // pred_region
      %73 = vsyncadd [#allocation9], 0
      %s74 = sshll.u32 %s9, 4
      %s75 = int_to_ptr.hbm [resolvable:$true] %s74
      %s76 = sshll.u32 [#allocation8], 4
      %s77 = int_to_ptr.vmem [resolvable:$true] %s76
      %82 = dma.hbm_to_vmem [thread:$0]  %s75, 256, %s77, [#allocation9], 64, 64, 4
    $region41: #{tpu_custom_call.1} parent=1 // pred_fallthru
      _
    // Predicated region
    $region42: #{tpu_custom_call.1} parent=1 // pred_check
      _
    $region43: #{tpu_custom_call.1} parent=1 // pred_check_branch
      %84 = sbr.rel (0) target = $region45
    $region44: #{tpu_custom_call.1} parent=1 // pred_region
      %86 = vsyncadd [#allocation9], 0
      %s87 = sshll.u32 %s10, 4
      %s88 = int_to_ptr.hbm [resolvable:$true] %s87
      %s89 = sshll.u32 [#allocation10], 4
      %s90 = int_to_ptr.vmem [resolvable:$true] %s89
      %95 = dma.hbm_to_vmem [thread:$0]  %s88, 256, %s90, [#allocation9], 64, 64, 4
    $region45: #{tpu_custom_call.1} parent=1 // pred_fallthru
      _
    // Predicated region
    $region46: #{tpu_custom_call.1} parent=1 // pred_check
      _
    $region47: #{tpu_custom_call.1} parent=1 // pred_check_branch
      %97 = sbr.rel (0) target = $region49
    $region48: #{tpu_custom_call.1} parent=1 // pred_region
      _
    $region49: #{tpu_custom_call.1} parent=1 // pred_fallthru
      _
    // Predicated region
    $region50: #{tpu_custom_call.1} parent=1 // pred_check
      _
    $region51: #{tpu_custom_call.1} parent=1 // pred_check_branch
      %99 = sbr.rel (0) target = $region53
    $region52: #{tpu_custom_call.1} parent=1 // pred_region
      %101 = dma.done [#allocation3], 256
    $region53: #{tpu_custom_call.1} parent=1 // pred_fallthru
      _
    // Predicated region
    $region54: #{tpu_custom_call.1} parent=1 // pred_check
      _
    $region55: #{tpu_custom_call.1} parent=1 // pred_check_branch
      %103 = sbr.rel (0) target = $region57
    $region56: #{tpu_custom_call.1} parent=1 // pred_region
      %105 = dma.done [#allocation6], 256
    $region57: #{tpu_custom_call.1} parent=1 // pred_fallthru
      _
    // Predicated region
    $region58: #{tpu_custom_call.1} parent=1 // pred_check
      _
    $region59: #{tpu_custom_call.1} parent=1 // pred_check_branch
      %107 = sbr.rel (0) target = $region61
    $region60: #{tpu_custom_call.1} parent=1 // pred_region
      %109 = dma.done [#allocation6], 128
    $region61: #{tpu_custom_call.1} parent=1 // pred_fallthru
      _
    // Predicated region
    $region62: #{tpu_custom_call.1} parent=1 // pred_check
      _
    $region63: #{tpu_custom_call.1} parent=1 // pred_check_branch
      %111 = sbr.rel (0) target = $region65
    $region64: #{tpu_custom_call.1} parent=1 // pred_region
      %113 = dma.done [#allocation9], 256
    $region65: #{tpu_custom_call.1} parent=1 // pred_fallthru
      _
    // Predicated region
    $region66: #{tpu_custom_call.1} parent=1 // pred_check
      _
    $region67: #{tpu_custom_call.1} parent=1 // pred_check_branch
      %115 = sbr.rel (0) target = $region69
    $region68: #{tpu_custom_call.1} parent=1 // pred_region
      %117 = dma.done [#allocation9], 256
    $region69: #{tpu_custom_call.1} parent=1 // pred_fallthru
      _
    %v119 = vld [vmem:[%s0] sm:$0xff]
    %v120 = vld [vmem:[%s0 + $0x8] sm:$0xff]
    %v121 = vld [vmem:[%s1] sm:$0xff]
    %v122 = vld [vmem:[%s1 + $0x8] sm:$0xff]
    %v123 = vld [vmem:[#allocation7] sm:$0xff]
    %v124 = vpack.c.bf16 %v120, %v119
    %v125 = vld [vmem:[%s2] sm:$0xf]
    %v126 = vld [vmem:[%s2 + $0x4] sm:$0xf]
    %v127 = vld [vmem:[%s2 + $0x8] sm:$0xf]
    %v128 = vld [vmem:[%s2 + $0xc] sm:$0xf]
    %v129 = vld [vmem:[%s3] sm:$0x1]
    %v131 = vperm.slane %v129, 0
    %v137 = vunpack.c.l.b16 %v125
    %v138 = vunpack.c.l.b16 %v126
    %v139 = vunpack.c.l.b16 %v127
    %v140 = vunpack.c.l.b16 %v128
    %v141 = vpack.c.b16 %v138, %v137
    %v142 = vpack.c.b16 %v140, %v139
    %vm145 = vcmask 261120
    %v147 = vsel %vm145, %v124, 0
    %149 = vmatpush.bf16.msra.mxu0 0
    %150 = vmatpush.bf16.msra.mxu0 0
    %151 = vmatpush.bf16.msra.mxu0 0
    %152 = vmatpush.bf16.msra.mxu0 0
    %153 = vmatpush.bf16.msra.mxu0 0
    %154 = vmatpush.bf16.msra.mxu0 0
    %155 = vmatpush.bf16.msra.mxu0 %v142
    %156 = vmatpush.bf16.msra.mxu0 %v141
    %157 = vmatmul.bf16.gmra.mxu0 %v147
    %v158 = vpop.f32.mrf.mxu0
    %v159 = vadd.f32 %v131, %v158
    %v160 = vpop.f32.mrf.mxu0
    %v161 = vadd.f32 %v131, %v160
    %162 = vdwg.mxu0
    %v163 = vpack.c.bf16 %v161, %v159
    %v164 = vlaneseq
    %v165 = vand.u32 %v164, 127
    %vm166 = vcmp.ge.s32.totalorder %v165, 0
    %vm167 = vcmp.lt.s32.totalorder %v165, 16
    %vm168 = vmand %vm166, %vm167
    %v169 = vsel %vm168, 1, 0
    %v170 = vcvt.s32.f32 %v169
    %v171 = vmul.f32 %v159, %v170
    %v172 = vmul.f32 %v161, %v170
    %v173 = vmul.f32 %v171, 0.25
    %v174 = vmul.f32 %v172, 0.25
    %v175 = vpack.c.bf16 %v174, %v173
    %177 = vrot.lane.b32.xlu0 %v163, 96
    %v178 = vpop.permute.xlu0 %177
    %v180 = vsel %vm145, %v175, 0
    %v183 = vsel %vm145, %v178, 0
    %185 = vmatpush.bf16.xpose.msra.mxu0 0
    %186 = vmatpush.bf16.xpose.msra.mxu0 0
    %187 = vmatpush.bf16.xpose.msra.mxu0 0
    %188 = vmatpush.bf16.xpose.msra.mxu0 0
    %189 = vmatpush.bf16.xpose.msra.mxu0 0
    %190 = vmatpush.bf16.xpose.msra.mxu0 0
    %191 = vmatpush.bf16.xpose.msra.mxu0 0
    %192 = vmatpush.bf16.xpose.msra.mxu0 %v183
    %193 = vmatmul.bf16.gmra.mxu0 %v180
    %v194 = vpop.f32.mrf.mxu0
    %v195 = vadd.f32 %v121, %v194
    %v196 = vpop.f32.mrf.mxu0
    %v197 = vadd.f32 %v122, %v196
    %198 = vdwg.mxu0
    %vm199 = vcmask 130048
    %v200 = vsel %vm199, %v195, -inf
    %201 = vmax.xlane.f32.xlu0 %v200
    %v202 = vpop.xlane.xlu0 %201
    %v203 = vsel %vm199, %v197, -inf
    %204 = vmax.xlane.f32.xlu0 %v203
    %v205 = vpop.xlane.xlu0 %204
    %v206 = vsub.f32 %v195, %v202
    %v207 = vsub.f32 %v197, %v205
    %v208 = vmul.f32 %v206, 1.442695
    %v209 = vpow.pop %v208
    %v210 = vmul.f32 %v207, 1.442695
    %v211 = vpow.pop %v210
    %v212 = vsel %vm199, %v209, 0.0
    %213 = vadd.xlane.f32.xlu0 %v212
    %v214 = vpop.xlane.xlu0 %213
    %v215 = vsel %vm199, %v211, 0.0
    %216 = vadd.xlane.f32.xlu0 %v215
    %v217 = vpop.xlane.xlu0 %216
    %v218 = vrcp.pop %v214
    %v219 = vrcp.pop %v217
    %v220 = vmul.f32 %v209, %v218
    %v221 = vmul.f32 %v211, %v219
    %223 = vrot.lane.b32.xlu0 %v170, 64
    %v224 = vpop.permute.xlu0 %223
    %v226 = vmul.f32 %v159, %v224
    %v227 = vmul.f32 %v161, %v224
    %v228 = vpack.c.bf16 %v227, %v226
    %v229 = vpack.c.bf16 %v221, %v220
    %vm230 = vcmp.ge.s32.totalorder %v165, 16
    %vm231 = vcmp.lt.s32.totalorder %v165, 32
    %vm232 = vmand %vm230, %vm231
    %v233 = vsel %vm232, 1, 0
    %v234 = vcvt.s32.f32 %v233
    %v235 = vmul.f32 %v159, %v234
    %v236 = vmul.f32 %v161, %v234
    %v237 = vmul.f32 %v235, 0.25
    %v238 = vmul.f32 %v236, 0.25
    %v239 = vpack.c.bf16 %v238, %v237
    %v241 = vsel %vm145, %v239, 0
    %243 = vmatpush.bf16.xpose.msra.mxu0 0
    %244 = vmatpush.bf16.xpose.msra.mxu0 0
    %245 = vmatpush.bf16.xpose.msra.mxu0 0
    %246 = vmatpush.bf16.xpose.msra.mxu0 0
    %247 = vmatpush.bf16.xpose.msra.mxu0 0
    %248 = vmatpush.bf16.xpose.msra.mxu0 0
    %249 = vmatpush.bf16.xpose.msra.mxu0 0
    %250 = vmatpush.bf16.xpose.msra.mxu0 %v183
    %251 = vmatmul.bf16.gmra.mxu0 %v241
    %v252 = vpop.f32.mrf.mxu0
    %v253 = vadd.f32 %v121, %v252
    %v254 = vpop.f32.mrf.mxu0
    %v255 = vadd.f32 %v122, %v254
    %256 = vdwg.mxu0
    %v257 = vsel %vm199, %v253, -inf
    %258 = vmax.xlane.f32.xlu0 %v257
    %v259 = vpop.xlane.xlu0 %258
    %v260 = vsel %vm199, %v255, -inf
    %261 = vmax.xlane.f32.xlu0 %v260
    %v262 = vpop.xlane.xlu0 %261
    %v263 = vsub.f32 %v253, %v259
    %v264 = vsub.f32 %v255, %v262
    %v265 = vmul.f32 %v263, 1.442695
    %v266 = vpow.pop %v265
    %v267 = vmul.f32 %v264, 1.442695
    %v268 = vpow.pop %v267
    %v269 = vsel %vm199, %v266, 0.0
    %270 = vadd.xlane.f32.xlu0 %v269
    %v271 = vpop.xlane.xlu0 %270
    %v272 = vsel %vm199, %v268, 0.0
    %273 = vadd.xlane.f32.xlu0 %v272
    %v274 = vpop.xlane.xlu0 %273
    %v275 = vrcp.pop %v271
    %v276 = vrcp.pop %v274
    %v277 = vmul.f32 %v266, %v275
    %v278 = vmul.f32 %v268, %v276
    %280 = vrot.lane.b32.xlu0 %v234, 64
    %v281 = vpop.permute.xlu0 %280
    %v283 = vmul.f32 %v159, %v281
    %v284 = vmul.f32 %v161, %v281
    %v285 = vpack.c.bf16 %v284, %v283
    %v286 = vpack.c.bf16 %v278, %v277
    %288 = vrot.lane.b32.xlu0 %v285, 64
    %v289 = vpop.permute.xlu0 %288
    %v292 = vsel %vm199, %v286, 0
    %294 = vmatpush.bf16.msra.mxu0 0
    %295 = vmatpush.bf16.msra.mxu0 0
    %296 = vmatpush.bf16.msra.mxu0 0
    %297 = vmatpush.bf16.msra.mxu0 0
    %298 = vmatpush.bf16.msra.mxu0 0
    %299 = vmatpush.bf16.msra.mxu0 0
    %300 = vmatpush.bf16.msra.mxu0 0
    %301 = vmatpush.bf16.msra.mxu0 %v289
    %302 = vmatmul.bf16.gmra.mxu0 %v292
    %v303 = vpop.f32.mrf.mxu0
    %v304 = vadd.f32 0.0, %v303
    %v305 = vpop.f32.mrf.mxu0
    %v306 = vadd.f32 0.0, %v305
    %307 = vdwg.mxu0
    %309 = vrot.lane.b32.xlu0 %v228, 64
    %v310 = vpop.permute.xlu0 %309
    %v313 = vsel %vm199, %v229, 0
    %315 = vmatpush.bf16.msra.mxu0 0
    %316 = vmatpush.bf16.msra.mxu0 0
    %317 = vmatpush.bf16.msra.mxu0 0
    %318 = vmatpush.bf16.msra.mxu0 0
    %319 = vmatpush.bf16.msra.mxu0 0
    %320 = vmatpush.bf16.msra.mxu0 0
    %321 = vmatpush.bf16.msra.mxu0 0
    %322 = vmatpush.bf16.msra.mxu0 %v310
    %323 = vmatmul.bf16.gmra.mxu0 %v313
    %v324 = vpop.f32.mrf.mxu0
    %v325 = vadd.f32 %v304, %v324
    %v326 = vpop.f32.mrf.mxu0
    %v327 = vadd.f32 %v306, %v326
    %328 = vdwg.mxu0
    %v329 = vpack.c.bf16 %v327, %v325
    %v330 = vld [vmem:[#allocation2] sm:$0xf]
    %v331 = vld [vmem:[#allocation2 + $0x4] sm:$0xf]
    %v332 = vld [vmem:[#allocation2 + $0x8] sm:$0xf]
    %v333 = vld [vmem:[#allocation2 + $0xc] sm:$0xf]
    %v334 = vperm.slane %v123, 0
    %v339 = vunpack.c.l.b16 %v330
    %v340 = vunpack.c.l.b16 %v331
    %v341 = vunpack.c.l.b16 %v332
    %v342 = vunpack.c.l.b16 %v333
    %v343 = vpack.c.b16 %v340, %v339
    %v344 = vpack.c.b16 %v342, %v341
    %v348 = vsel %vm145, %v329, 0
    %350 = vmatpush.bf16.msra.mxu0 0
    %351 = vmatpush.bf16.msra.mxu0 0
    %352 = vmatpush.bf16.msra.mxu0 0
    %353 = vmatpush.bf16.msra.mxu0 0
    %354 = vmatpush.bf16.msra.mxu0 0
    %355 = vmatpush.bf16.msra.mxu0 0
    %356 = vmatpush.bf16.msra.mxu0 %v344
    %357 = vmatpush.bf16.msra.mxu0 %v343
    %358 = vmatmul.bf16.gmra.mxu0 %v348
    %v359 = vpop.f32.mrf.mxu0
    %v360 = vadd.f32 %v334, %v359
    %v361 = vpop.f32.mrf.mxu0
    %v362 = vadd.f32 %v334, %v361
    %363 = vdwg.mxu0
    %v364 = vadd.f32 %v119, %v360
    %v365 = vadd.f32 %v120, %v362
    %v366 = vsel %vm145, %v364, 0.0
    %367 = vadd.xlane.f32.xlu0 %v366
    %v368 = vpop.xlane.xlu0 %367
    %v369 = vsel %vm145, %v365, 0.0
    %370 = vadd.xlane.f32.xlu0 %v369
    %v371 = vpop.xlane.xlu0 %370
    %v372 = vrcp.pop 32.0
    %v373 = vmul.f32 32.0, %v372
    %v374 = vsub.f32 1.0, %v373
    %v375 = vmul.f32 %v372, %v374
    %v376 = vadd.f32 %v372, %v375
    %vm377 = vweird.f32 %v372
    %v378 = vsel %vm377, %v372, %v376
    %v379 = vmul.f32 %v368, %v378
    %v380 = vmul.f32 %v371, %v378
    %v381 = vsub.f32 %v364, %v379
    %v382 = vsub.f32 %v365, %v380
    %v383 = vmul.f32 %v381, %v381
    %v384 = vmul.f32 %v382, %v382
    %v385 = vsel %vm145, %v383, 0.0
    %386 = vadd.xlane.f32.xlu0 %v385
    %v387 = vpop.xlane.xlu0 %386
    %v388 = vsel %vm145, %v384, 0.0
    %389 = vadd.xlane.f32.xlu0 %v388
    %v390 = vpop.xlane.xlu0 %389
    %v391 = vmul.f32 %v387, %v378
    %v392 = vmul.f32 %v390, %v378
    %v393 = vadd.f32 %v391, 1e-12
    %v394 = vadd.f32 %v392, 1e-12
    %v395 = vrsqrt.pop %v393
    %v396 = vmul.f32 %v395, %v393
    %v397 = vmul.f32 %v396, %v395
    %v398 = vmul.f32 0.5, %v397
    %v399 = vsub.f32 1.5, %v398
    %v400 = vmul.f32 %v395, %v399
    %vm401 = vweird.f32 %v393
    %vm402 = vweird.f32 %v395
    %vm403 = vmor %vm401, %vm402
    %v404 = vsel %vm403, %v395, %v400
    %v405 = vrsqrt.pop %v394
    %v406 = vmul.f32 %v405, %v394
    %v407 = vmul.f32 %v406, %v405
    %v408 = vmul.f32 0.5, %v407
    %v409 = vsub.f32 1.5, %v408
    %v410 = vmul.f32 %v405, %v409
    %vm411 = vweird.f32 %v394
    %vm412 = vweird.f32 %v405
    %vm413 = vmor %vm411, %vm412
    %v414 = vsel %vm413, %v405, %v410
    %v415 = vmul.f32 %v381, %v404
    %v416 = vmul.f32 %v382, %v414
    %v417 = vperm.slane %v123, 1
    %v418 = vmul.f32 %v415, %v417
    %v419 = vmul.f32 %v416, %v417
    %v420 = vperm.slane %v123, 2
    %v421 = vadd.f32 %v418, %v420
    %v422 = vadd.f32 %v419, %v420
    %v423 = vpack.c.bf16 %v422, %v421
    %v424 = vld [vmem:[#allocation5] sm:$0xf]
    %v425 = vld [vmem:[#allocation5 + $0x4] sm:$0xf]
    %v426 = vld [vmem:[#allocation5 + $0x8] sm:$0xf]
    %v427 = vld [vmem:[#allocation5 + $0xc] sm:$0xf]
    %v428 = vld [vmem:[%s6] sm:$0x1]
    %v430 = vperm.slane %v428, 0
    %v436 = vunpack.c.l.b16 %v424
    %v437 = vunpack.c.l.b16 %v425
    %v438 = vunpack.c.l.b16 %v426
    %v439 = vunpack.c.l.b16 %v427
    %v440 = vpack.c.b16 %v437, %v436
    %v441 = vpack.c.b16 %v439, %v438
    %v445 = vsel %vm145, %v423, 0
    %447 = vmatpush.bf16.msra.mxu0 0
    %448 = vmatpush.bf16.msra.mxu0 0
    %449 = vmatpush.bf16.msra.mxu0 0
    %450 = vmatpush.bf16.msra.mxu0 0
    %451 = vmatpush.bf16.msra.mxu0 0
    %452 = vmatpush.bf16.msra.mxu0 0
    %453 = vmatpush.bf16.msra.mxu0 %v441
    %454 = vmatpush.bf16.msra.mxu0 %v440
    %455 = vmatmul.bf16.gmra.mxu0 %v445
    %v456 = vpop.f32.mrf.mxu0
    %v457 = vadd.f32 %v430, %v456
    %v458 = vpop.f32.mrf.mxu0
    %v459 = vadd.f32 %v430, %v458
    %460 = vdwg.mxu0
    %v461 = vmul.f32 %v457, 0.5
    %v462 = vmul.f32 %v459, 0.5
    %v463 = vmul.f32 %v457, 0.044715
    %v464 = vmul.f32 %v459, 0.044715
    %v465 = vmul.f32 %v463, %v457
    %v466 = vmul.f32 %v464, %v459
    %v467 = vmul.f32 %v465, %v457
    %v468 = vmul.f32 %v466, %v459
    %v469 = vadd.f32 %v457, %v467
    %v470 = vadd.f32 %v459, %v468
    %v471 = vmul.f32 %v469, 0.7978846
    %v472 = vmul.f32 %v470, 0.7978846
    %v473 = vtanh.pop %v471
    %v474 = vtanh.pop %v472
    %v475 = vadd.f32 %v473, 1.0
    %v476 = vadd.f32 %v474, 1.0
    %v477 = vmul.f32 %v461, %v475
    %v478 = vmul.f32 %v462, %v476
    %v479 = vpack.c.bf16 %v478, %v477
    %v480 = vld [vmem:[%s7] sm:$0xf]
    %v481 = vld [vmem:[%s7 + $0x4] sm:$0xf]
    %v482 = vld [vmem:[%s7 + $0x8] sm:$0xf]
    %v483 = vld [vmem:[%s7 + $0xc] sm:$0xf]
    %v484 = vld [vmem:[%s7 + $0x10] sm:$0xf]
    %v485 = vld [vmem:[%s7 + $0x14] sm:$0xf]
    %v486 = vld [vmem:[%s7 + $0x18] sm:$0xf]
    %v487 = vld [vmem:[%s7 + $0x1c] sm:$0xf]
    %v488 = vperm.slane %v123, 3
    %v497 = vunpack.c.l.b16 %v480
    %v498 = vunpack.c.l.b16 %v481
    %v499 = vunpack.c.l.b16 %v482
    %v500 = vunpack.c.l.b16 %v483
    %v501 = vunpack.c.l.b16 %v484
    %v502 = vunpack.c.l.b16 %v485
    %v503 = vunpack.c.l.b16 %v486
    %v504 = vunpack.c.l.b16 %v487
    %v505 = vpack.c.b16 %v498, %v497
    %v506 = vpack.c.b16 %v500, %v499
    %v507 = vpack.c.b16 %v502, %v501
    %v508 = vpack.c.b16 %v504, %v503
    %vm513 = vcmask 523264
    %v515 = vsel %vm513, %v479, 0
    %517 = vmatpush.bf16.msra.mxu0 0
    %518 = vmatpush.bf16.msra.mxu0 0
    %519 = vmatpush.bf16.msra.mxu0 0
    %520 = vmatpush.bf16.msra.mxu0 0
    %521 = vmatpush.bf16.msra.mxu0 %v508
    %522 = vmatpush.bf16.msra.mxu0 %v507
    %523 = vmatpush.bf16.msra.mxu0 %v506
    %524 = vmatpush.bf16.msra.mxu0 %v505
    %525 = vmatmul.bf16.gmra.mxu0 %v515
    %v526 = vpop.f32.mrf.mxu0
    %v527 = vadd.f32 %v488, %v526
    %v528 = vpop.f32.mrf.mxu0
    %v529 = vadd.f32 %v488, %v528
    %530 = vdwg.mxu0
    %v531 = vadd.f32 %v421, %v527
    %v532 = vadd.f32 %v422, %v529
    %v533 = vsel %vm145, %v531, 0.0
    %534 = vadd.xlane.f32.xlu0 %v533
    %v535 = vpop.xlane.xlu0 %534
    %v536 = vsel %vm145, %v532, 0.0
    %537 = vadd.xlane.f32.xlu0 %v536
    %v538 = vpop.xlane.xlu0 %537
    %v539 = vmul.f32 %v535, %v378
    %v540 = vmul.f32 %v538, %v378
    %v541 = vsub.f32 %v531, %v539
    %v542 = vsub.f32 %v532, %v540
    %v543 = vmul.f32 %v541, %v541
    %v544 = vmul.f32 %v542, %v542
    %v545 = vsel %vm145, %v543, 0.0
    %546 = vadd.xlane.f32.xlu0 %v545
    %v547 = vpop.xlane.xlu0 %546
    %v548 = vsel %vm145, %v544, 0.0
    %549 = vadd.xlane.f32.xlu0 %v548
    %v550 = vpop.xlane.xlu0 %549
    %v551 = vmul.f32 %v547, %v378
    %v552 = vmul.f32 %v550, %v378
    %v553 = vadd.f32 %v551, 1e-12
    %v554 = vadd.f32 %v552, 1e-12
    %v555 = vrsqrt.pop %v553
    %v556 = vmul.f32 %v555, %v553
    %v557 = vmul.f32 %v556, %v555
    %v558 = vmul.f32 0.5, %v557
    %v559 = vsub.f32 1.5, %v558
    %v560 = vmul.f32 %v555, %v559
    %vm561 = vweird.f32 %v553
    %vm562 = vweird.f32 %v555
    %vm563 = vmor %vm561, %vm562
    %v564 = vsel %vm563, %v555, %v560
    %v565 = vrsqrt.pop %v554
    %v566 = vmul.f32 %v565, %v554
    %v567 = vmul.f32 %v566, %v565
    %v568 = vmul.f32 0.5, %v567
    %v569 = vsub.f32 1.5, %v568
    %v570 = vmul.f32 %v565, %v569
    %vm571 = vweird.f32 %v554
    %vm572 = vweird.f32 %v565
    %vm573 = vmor %vm571, %vm572
    %v574 = vsel %vm573, %v565, %v570
    %v575 = vmul.f32 %v541, %v564
    %v576 = vmul.f32 %v542, %v574
    %v577 = vperm.slane %v123, 4
    %v578 = vmul.f32 %v575, %v577
    %v579 = vmul.f32 %v576, %v577
    %v580 = vperm.slane %v123, 5
    %v581 = vadd.f32 %v578, %v580
    %v582 = vadd.f32 %v579, %v580
    %v583 = vlaneseq
    %v584 = vshrl.u32 %v583, 7
    %v585 = vmul.u32 %v584, 8
    %vm586 = vcmp.eq.s32.totalorder %v165, %v585
    %v587 = vsel %vm586, 1, 0
    %v588 = vcvt.s32.f32 %v587
    %v590 = vsel %vm199, %v588, 0
    %592 = vmatpush.msra.mxu0 0.0
    %593 = vmatpush.msra.mxu0 0.0
    %594 = vmatpush.msra.mxu0 0.0
    %595 = vmatpush.msra.mxu0 0.0
    %596 = vmatpush.msra.mxu0 0.0
    %597 = vmatpush.msra.mxu0 0.0
    %598 = vmatpush.msra.mxu0 0.0
    %599 = vmatpush.msra.mxu0 0.0
    %600 = vmatpush.msra.mxu0 0.0
    %601 = vmatpush.msra.mxu0 0.0
    %602 = vmatpush.msra.mxu0 0.0
    %603 = vmatpush.msra.mxu0 0.0
    %604 = vmatpush.msra.mxu0 0.0
    %605 = vmatpush.msra.mxu0 0.0
    %606 = vmatpush.msra.mxu0 %v582
    %607 = vmatpush.msra.mxu0 %v581
    %608 = vmatmul.f32.gmra.mxu0 %v590
    %v609 = vpop.f32.mrf.mxu0
    %v610 = vadd.f32 0.0, %v609
    %611 = vdwg.mxu0
    %v612 = vpack.c.bf16 %v610, %v610
    %v613 = vld [vmem:[#allocation8] sm:$0xf]
    %v614 = vld [vmem:[#allocation8 + $0x4] sm:$0xf]
    %v615 = vld [vmem:[#allocation8 + $0x8] sm:$0xf]
    %v616 = vld [vmem:[#allocation8 + $0xc] sm:$0xf]
    %v617 = vperm.slane %v123, 6
    %v622 = vunpack.c.l.b16 %v613
    %v623 = vunpack.c.l.b16 %v614
    %v624 = vunpack.c.l.b16 %v615
    %v625 = vunpack.c.l.b16 %v616
    %v626 = vpack.c.b16 %v623, %v622
    %v627 = vpack.c.b16 %v625, %v624
    %v631 = vsel %vm145, %v612, 0
    %633 = vmatpush.bf16.msra.mxu0 0
    %634 = vmatpush.bf16.msra.mxu0 0
    %635 = vmatpush.bf16.msra.mxu0 0
    %636 = vmatpush.bf16.msra.mxu0 0
    %637 = vmatpush.bf16.msra.mxu0 0
    %638 = vmatpush.bf16.msra.mxu0 0
    %639 = vmatpush.bf16.msra.mxu0 %v627
    %640 = vmatpush.bf16.msra.mxu0 %v626
    %641 = vmatmul.bf16.gmra.mxu0 %v631
    %v642 = vpop.f32.mrf.mxu0
    %v643 = vadd.f32 %v617, %v642
    %v644 = vpop.f32.mrf.mxu0
    %645 = vdwg.mxu0
    %v646 = vtanh.pop %v643
    %v647 = vpack.c.bf16 %v646, %v646
    %v648 = vld [vmem:[#allocation10] sm:$0xf]
    %v649 = vld [vmem:[#allocation10 + $0x4] sm:$0xf]
    %v650 = vld [vmem:[#allocation10 + $0x8] sm:$0xf]
    %v651 = vld [vmem:[#allocation10 + $0xc] sm:$0xf]
    %v652 = vld [vmem:[%s11] sm:$0x1]
    %v654 = vperm.slane %v652, 0
    %v660 = vunpack.c.l.b16 %v648
    %v661 = vunpack.c.l.b16 %v649
    %v662 = vunpack.c.l.b16 %v650
    %v663 = vunpack.c.l.b16 %v651
    %v664 = vpack.c.b16 %v661, %v660
    %v665 = vpack.c.b16 %v663, %v662
    %v669 = vsel %vm145, %v647, 0
    %671 = vmatpush.bf16.msra.mxu0 0
    %672 = vmatpush.bf16.msra.mxu0 0
    %673 = vmatpush.bf16.msra.mxu0 0
    %674 = vmatpush.bf16.msra.mxu0 0
    %675 = vmatpush.bf16.msra.mxu0 0
    %676 = vmatpush.bf16.msra.mxu0 0
    %677 = vmatpush.bf16.msra.mxu0 %v665
    %678 = vmatpush.bf16.msra.mxu0 %v664
    %679 = vmatmul.bf16.gmra.mxu0 %v669
    %v680 = vpop.f32.mrf.mxu0
    %v681 = vadd.f32 %v654, %v680
    %v682 = vpop.f32.mrf.mxu0
    %683 = vdwg.mxu0
    %684 = vst [vmem:[#allocation11] sm:$0x3] %v681
    // Predicated region
    $region70: #{tpu_custom_call.1} parent=1 // pred_check
      _
    $region71: #{tpu_custom_call.1} parent=1 // pred_check_branch
      %686 = sbr.rel (0) target = $region73
    $region72: #{tpu_custom_call.1} parent=1 // pred_region
      %688 = vsyncadd [#allocation4], 0
      %s690 = sshll.u32 [#allocation11], 4
      %s691 = int_to_ptr.vmem [resolvable:$true] %s690
      %s692 = sshll.u32 %s12, 4
      %s693 = int_to_ptr.hbm [resolvable:$true] %s692
      %695 = dma.vmem_to_hbm [thread:$0]  %s691, 32, %s693, [#allocation4]
    $region73: #{tpu_custom_call.1} parent=1 // pred_fallthru
      _
    // Predicated region
    $region74: #{tpu_custom_call.1} parent=1 // pred_check
      _
    $region75: #{tpu_custom_call.1} parent=1 // pred_check_branch
      %697 = sbr.rel (0) target = $region77
    $region76: #{tpu_custom_call.1} parent=1 // pred_region
      %699 = dma.done [#allocation4], 32
    $region77: #{tpu_custom_call.1} parent=1 // pred_fallthru
      _
    %700 = vsyncpa [#allocation3], 1
    %701 = vsyncpa [#allocation6], 1
    %702 = vsyncpa [#allocation9], 1
    %703 = vsyncpa [#allocation4], 1

</llo_original>
